<compile_context>
chip_gen: v7x
topology: tpu7x:2x2x1
jax: 0.10.0
libtpu: 0.0.40
codegen_flags: <defaults>
</compile_context>

<pallas_src>
import jax
import jax.numpy as jnp
from jax.experimental import pallas as pl
from jax.experimental.pallas import tpu as pltpu


def attention_kernel(x_ref, w_ref, b_ref, o_ref, m_sc, l_sc, acc_sc):
    """One (batch-tile, seq-tile) step of the online-softmax attention pool."""
    k = pl.program_id(1)

    @pl.when(k == 0)
    def _init():
        m_sc[...] = jnp.full(m_sc.shape, -jnp.inf, dtype=m_sc.dtype)
        l_sc[...] = jnp.zeros(l_sc.shape, dtype=l_sc.dtype)
        acc_sc[...] = jnp.zeros(acc_sc.shape, dtype=acc_sc.dtype)

    w = w_ref[...].astype(jnp.float32)                               # (1, H)

    # Scores for this (TB, TS) tile: VPU multiply + lane (H) reduce + SMEM bias.
    x = x_ref[...].astype(jnp.float32)                               # (TB, TS, H)
    s = jnp.sum(x * w, axis=-1, keepdims=True) + b_ref[0, 0]         # (TB, TS, 1)

    # Online softmax update over the sequence axis.
    m_prev = m_sc[...]                                               # (TB, 1, 1)
    m_new = jnp.maximum(m_prev, jnp.max(s, axis=1, keepdims=True))   # (TB, 1, 1)
    alpha = jnp.exp(m_prev - m_new)                                  # (TB, 1, 1)
    p = jnp.exp(s - m_new)                                           # (TB, TS, 1)
    l_sc[...] = alpha * l_sc[...] + jnp.sum(p, axis=1, keepdims=True)

    # Context accumulator.  Re-read x from VMEM rather than keeping the whole
    # f32 slab live in vregs across the softmax computation above.
    x2 = x_ref[...].astype(jnp.float32)                              # (TB, TS, H)
    acc_sc[...] = alpha[:, 0, :] * acc_sc[...] + jnp.sum(p * x2, axis=1)
    m_sc[...] = m_new

    @pl.when(k == pl.num_programs(1) - 1)
    def _finalize():
        # Exact divide: one per output row, negligible cost, no approx error.
        o_ref[...] = (acc_sc[...] / l_sc[...][:, 0, :]).astype(o_ref.dtype)


def _pick_tile(dim, cap, unit):
    """Largest divisor of `dim` that is <= cap and a multiple of `unit`;
    falls back to `dim` itself (full extent) if none exists."""
    cap = int(max(1, min(dim, cap)))
    for d in range(cap - cap % unit, 0, -unit):
        if dim % d == 0:
            return d
    return dim


def attention_forward(x, w, b, *, tb=None, ts=None, target_block_bytes=4 << 20):
    """x: (B, S, H); w: (1, H) nn.Linear weight; b: (1, 1) bias -> (B, H)."""
    B, S, H = x.shape
    itemsize = jnp.dtype(x.dtype).itemsize

    # ---- tile selection: size blocks by bytes (~2-8 MiB), keep (8,128) rules.
    if tb is None:
        row_bytes = max(1, S * H * itemsize)
        tb = _pick_tile(B, target_block_bytes // row_bytes, 8)
        # v7x has 2 TensorCores: keep >= 2 batch tiles when B is large enough
        # so the "parallel" batch axis can actually be sharded across cores.
        if B // tb < 2 <= B // 8:
            tb = _pick_tile(B, B // 2, 8)
    if ts is None:
        if tb * S * H * itemsize <= target_block_bytes:
            ts = S
        else:
            ts = _pick_tile(S, target_block_bytes // max(1, tb * H * itemsize), 8)
    assert B % tb == 0 and S % ts == 0, (tb, ts)

    # Explicit VMEM budget: double-buffered x block + out block + weight +
    # scratch, plus slack.  Stays under v5e's 16 MiB scoped default and well
    # under v7x's 64 MiB physical VMEM for the default 4 MiB block target.
    x_block_bytes = tb * ts * H * itemsize
    vmem_limit = int(2 * x_block_bytes + 2 * tb * H * 4 + 2 * H * 4
                     + tb * (H + 8) * 4 + (2 << 20))
    vmem_limit = max(vmem_limit, 4 << 20)

    cost = pl.CostEstimate(
        flops=4 * B * S * H,                      # scores + weighted sum
        transcendentals=B * S,                    # exp per (batch, seq) element
        bytes_accessed=B * S * H * itemsize + B * H * itemsize + H * itemsize,
    )

    grid = (B // tb, S // ts)
    return pl.pallas_call(
        attention_kernel,
        out_shape=jax.ShapeDtypeStruct((B, H), x.dtype),
        grid_spec=pltpu.PrefetchScalarGridSpec(
            num_scalar_prefetch=0,
            grid=grid,
            in_specs=[
                # (TB, TS, H) slab of x per grid step.
                pl.BlockSpec((tb, ts, H), lambda i, k: (i, k, 0)),
                # Shared weight, lane-dense (1, H).
                pl.BlockSpec((1, H), lambda i, k: (0, 0)),
                # Scalar bias in SMEM.
                pl.BlockSpec((1, 1), lambda i, k: (0, 0),
                             memory_space=pltpu.MemorySpace.SMEM),
            ],
            # Constant in k: the output tile stays resident across the S
            # reduction and is written once at the last sequence step.
            out_specs=pl.BlockSpec((tb, H), lambda i, k: (i, 0)),
            scratch_shapes=[
                pltpu.VMEM((tb, 1, 1), jnp.float32),   # running max  m
                pltpu.VMEM((tb, 1, 1), jnp.float32),   # running sum  l
                pltpu.VMEM((tb, H), jnp.float32),      # context accumulator
            ],
        ),
        compiler_params=pltpu.CompilerParams(
            dimension_semantics=("parallel", "arbitrary"),
            vmem_limit_bytes=vmem_limit,
        ),
        cost_estimate=cost,
    )(x, w, b)


def attention_reference(x, w, b):
    s = jnp.einsum("bsh,oh->bso", x, w) + b[0, 0]          # (B, S, 1)
    p = jax.nn.softmax(s, axis=1)                          # softmax over seq
    return jnp.sum(p * x, axis=1)                          # (B, H)


if __name__ == "__main__":
    key = jax.random.PRNGKey(0)
    kx, kw, kb, kx2 = jax.random.split(key, 4)

    # Small shapes consistent with the module: batch=2, seq=8, hidden=32.
    B, S, H = 2, 8, 32
    x = jax.random.normal(kx, (B, S, H), dtype=jnp.float32)
    # nn.Linear(hidden_dim, 1): weight (1, H), bias (1,) stored as (1, 1).
    w = jax.random.normal(kw, (1, H), dtype=jnp.float32) * 0.1
    b = jax.random.normal(kb, (1, 1), dtype=jnp.float32) * 0.1

    out = jax.block_until_ready(attention_forward(x, w, b))
    ref = attention_reference(x, w, b)
    assert out.shape == (B, H)
    assert jnp.allclose(out, ref, atol=1e-4, rtol=1e-4), "mismatch vs reference"

    # Exercise the S-tiled online-softmax path (2 sequence steps per batch tile).
    S2 = 16
    x2 = jax.random.normal(kx2, (B, S2, H), dtype=jnp.float32)
    out2 = jax.block_until_ready(attention_forward(x2, w, b, ts=8))
    ref2 = attention_reference(x2, w, b)
    assert jnp.allclose(out2, ref2, atol=1e-4, rtol=1e-4), "mismatch (S-tiled path)"

    print("KERNEL_OK")
</pallas_src>

<mosaic_0001>
module attributes {stable_mosaic.version = 11 : i64} {
  func.func @attention_kernel(%arg0: i32, %arg1: i32, %arg2: memref<2x8x32xf32, #tpu.memory_space<vmem>>, %arg3: memref<1x32xf32, #tpu.memory_space<vmem>>, %arg4: memref<1x1xf32, #tpu.memory_space<smem>>, %arg5: memref<2x32xf32, #tpu.memory_space<vmem>>, %arg6: memref<2x1x1xf32, #tpu.memory_space<vmem>>, %arg7: memref<2x1x1xf32, #tpu.memory_space<vmem>>, %arg8: memref<2x32xf32, #tpu.memory_space<vmem>>) attributes {dimension_semantics = [#tpu.dimension_semantics<parallel>, #tpu.dimension_semantics<arbitrary>], iteration_bounds = array<i64: 1, 1>, scalar_prefetch = 0 : i64, scratch_operands = 3 : i64, tpu.core_type = #tpu.core_type<tc>, window_params = [{transform_indices = @transform_0, window_bounds = array<i64: 2, 8, 32>}, {pipeline_mode = #tpu.pipeline_mode<synchronous>, transform_indices = @transform_1, window_bounds = array<i64: 1, 32>}, {transform_indices = @transform_2, window_bounds = array<i64: 1, 1>}, {transform_indices = @transform_3, window_bounds = array<i64: 2, 32>}]} {
    %c0_i32 = arith.constant 0 : i32
    %0 = arith.cmpi eq, %arg1, %c0_i32 : i32
    %1 = arith.extui %0 : i1 to i32
    %c0_i32_0 = arith.constant 0 : i32
    %2 = arith.cmpi ne, %1, %c0_i32_0 : i32
    scf.if %2 {
      %cst_31 = arith.constant 0xFF800000 : f32
      %42 = vector.broadcast %cst_31 : f32 to vector<2x1x1xf32>
      %c0_32 = arith.constant 0 : index
      %c0_33 = arith.constant 0 : index
      %c0_34 = arith.constant 0 : index
      %43 = vector.load %arg6[%c0_32, %c0_33, %c0_34] : memref<2x1x1xf32, #tpu.memory_space<vmem>>, vector<2x1x1xf32>
      tpu.vector_store %arg6[%c0_32, %c0_33, %c0_34], %42 {strides = array<i32>} : memref<2x1x1xf32, #tpu.memory_space<vmem>>, vector<2x1x1xf32>,
      %cst_35 = arith.constant 0.000000e+00 : f32
      %44 = vector.broadcast %cst_35 : f32 to vector<2x1x1xf32>
      %c0_36 = arith.constant 0 : index
      %c0_37 = arith.constant 0 : index
      %c0_38 = arith.constant 0 : index
      %45 = vector.load %arg7[%c0_36, %c0_37, %c0_38] : memref<2x1x1xf32, #tpu.memory_space<vmem>>, vector<2x1x1xf32>
      tpu.vector_store %arg7[%c0_36, %c0_37, %c0_38], %44 {strides = array<i32>} : memref<2x1x1xf32, #tpu.memory_space<vmem>>, vector<2x1x1xf32>,
      %cst_39 = arith.constant 0.000000e+00 : f32
      %46 = vector.broadcast %cst_39 : f32 to vector<2x32xf32>
      %c0_40 = arith.constant 0 : index
      %c0_41 = arith.constant 0 : index
      %47 = vector.load %arg8[%c0_40, %c0_41] : memref<2x32xf32, #tpu.memory_space<vmem>>, vector<2x32xf32>
      tpu.vector_store %arg8[%c0_40, %c0_41], %46 {strides = array<i32>} : memref<2x32xf32, #tpu.memory_space<vmem>>, vector<2x32xf32>,
    } else {
    }
    %c0 = arith.constant 0 : index
    %c0_1 = arith.constant 0 : index
    %3 = vector.load %arg3[%c0, %c0_1] : memref<1x32xf32, #tpu.memory_space<vmem>>, vector<1x32xf32>
    %c0_2 = arith.constant 0 : index
    %c0_3 = arith.constant 0 : index
    %c0_4 = arith.constant 0 : index
    %4 = vector.load %arg2[%c0_2, %c0_3, %c0_4] : memref<2x8x32xf32, #tpu.memory_space<vmem>>, vector<2x8x32xf32>
    %5 = vector.shape_cast %3 : vector<1x32xf32> to vector<1x1x32xf32>
    %6 = vector.broadcast %5 : vector<1x1x32xf32> to vector<2x8x32xf32>
    %7 = arith.mulf %4, %6 : vector<2x8x32xf32>
    %cst = arith.constant dense<0.000000e+00> : vector<2x8xf32>
    %8 = vector.multi_reduction <add>, %7, %cst [2] : vector<2x8x32xf32> to vector<2x8xf32>
    %9 = vector.shape_cast %8 : vector<2x8xf32> to vector<2x8x1xf32>
    %c0_5 = arith.constant 0 : index
    %c0_6 = arith.constant 0 : index
    %10 = memref.load %arg4[%c0_5, %c0_6] : memref<1x1xf32, #tpu.memory_space<smem>>
    %11 = vector.broadcast %10 : f32 to vector<2x8x1xf32>
    %12 = arith.addf %9, %11 : vector<2x8x1xf32>
    %c0_7 = arith.constant 0 : index
    %c0_8 = arith.constant 0 : index
    %c0_9 = arith.constant 0 : index
    %13 = vector.load %arg6[%c0_7, %c0_8, %c0_9] : memref<2x1x1xf32, #tpu.memory_space<vmem>>, vector<2x1x1xf32>
    %cst_10 = arith.constant dense<0xFF800000> : vector<2x1xf32>
    %14 = vector.multi_reduction <maximumf>, %12, %cst_10 [1] : vector<2x8x1xf32> to vector<2x1xf32>
    %15 = vector.shape_cast %14 : vector<2x1xf32> to vector<2x1x1xf32>
    %16 = arith.maximumf %13, %15 : vector<2x1x1xf32>
    %17 = arith.subf %13, %16 : vector<2x1x1xf32>
    %18 = math.exp %17 : vector<2x1x1xf32>
    %19 = vector.broadcast %16 : vector<2x1x1xf32> to vector<2x8x1xf32>
    %20 = arith.subf %12, %19 : vector<2x8x1xf32>
    %21 = math.exp %20 : vector<2x8x1xf32>
    %c0_11 = arith.constant 0 : index
    %c0_12 = arith.constant 0 : index
    %c0_13 = arith.constant 0 : index
    %22 = vector.load %arg7[%c0_11, %c0_12, %c0_13] : memref<2x1x1xf32, #tpu.memory_space<vmem>>, vector<2x1x1xf32>
    %23 = arith.mulf %18, %22 : vector<2x1x1xf32>
    %cst_14 = arith.constant dense<0.000000e+00> : vector<2x1xf32>
    %24 = vector.multi_reduction <add>, %21, %cst_14 [1] : vector<2x8x1xf32> to vector<2x1xf32>
    %25 = vector.shape_cast %24 : vector<2x1xf32> to vector<2x1x1xf32>
    %26 = arith.addf %23, %25 : vector<2x1x1xf32>
    %c0_15 = arith.constant 0 : index
    %c0_16 = arith.constant 0 : index
    %c0_17 = arith.constant 0 : index
    %27 = vector.load %arg7[%c0_15, %c0_16, %c0_17] : memref<2x1x1xf32, #tpu.memory_space<vmem>>, vector<2x1x1xf32>
    tpu.vector_store %arg7[%c0_15, %c0_16, %c0_17], %26 {strides = array<i32>} : memref<2x1x1xf32, #tpu.memory_space<vmem>>, vector<2x1x1xf32>,
    %c0_18 = arith.constant 0 : index
    %c0_19 = arith.constant 0 : index
    %c0_20 = arith.constant 0 : index
    %28 = vector.load %arg2[%c0_18, %c0_19, %c0_20] : memref<2x8x32xf32, #tpu.memory_space<vmem>>, vector<2x8x32xf32>
    %29 = vector.shape_cast %18 : vector<2x1x1xf32> to vector<2x1xf32>
    %c0_21 = arith.constant 0 : index
    %c0_22 = arith.constant 0 : index
    %30 = vector.load %arg8[%c0_21, %c0_22] : memref<2x32xf32, #tpu.memory_space<vmem>>, vector<2x32xf32>
    %31 = vector.broadcast %29 : vector<2x1xf32> to vector<2x32xf32>
    %32 = arith.mulf %31, %30 : vector<2x32xf32>
    %33 = vector.broadcast %21 : vector<2x8x1xf32> to vector<2x8x32xf32>
    %34 = arith.mulf %33, %28 : vector<2x8x32xf32>
    %cst_23 = arith.constant dense<0.000000e+00> : vector<2x32xf32>
    %35 = vector.multi_reduction <add>, %34, %cst_23 [1] : vector<2x8x32xf32> to vector<2x32xf32>
    %36 = arith.addf %32, %35 : vector<2x32xf32>
    %c0_24 = arith.constant 0 : index
    %c0_25 = arith.constant 0 : index
    %37 = vector.load %arg8[%c0_24, %c0_25] : memref<2x32xf32, #tpu.memory_space<vmem>>, vector<2x32xf32>
    tpu.vector_store %arg8[%c0_24, %c0_25], %36 {strides = array<i32>} : memref<2x32xf32, #tpu.memory_space<vmem>>, vector<2x32xf32>,
    %c0_26 = arith.constant 0 : index
    %c0_27 = arith.constant 0 : index
    %c0_28 = arith.constant 0 : index
    %38 = vector.load %arg6[%c0_26, %c0_27, %c0_28] : memref<2x1x1xf32, #tpu.memory_space<vmem>>, vector<2x1x1xf32>
    tpu.vector_store %arg6[%c0_26, %c0_27, %c0_28], %16 {strides = array<i32>} : memref<2x1x1xf32, #tpu.memory_space<vmem>>, vector<2x1x1xf32>,
    %c0_i32_29 = arith.constant 0 : i32
    %39 = arith.cmpi eq, %arg1, %c0_i32_29 : i32
    %40 = arith.extui %39 : i1 to i32
    %c0_i32_30 = arith.constant 0 : i32
    %41 = arith.cmpi ne, %40, %c0_i32_30 : i32
    scf.if %41 {
      %c0_31 = arith.constant 0 : index
      %c0_32 = arith.constant 0 : index
      %42 = vector.load %arg8[%c0_31, %c0_32] : memref<2x32xf32, #tpu.memory_space<vmem>>, vector<2x32xf32>
      %c0_33 = arith.constant 0 : index
      %c0_34 = arith.constant 0 : index
      %c0_35 = arith.constant 0 : index
      %43 = vector.load %arg7[%c0_33, %c0_34, %c0_35] : memref<2x1x1xf32, #tpu.memory_space<vmem>>, vector<2x1x1xf32>
      %44 = vector.shape_cast %43 : vector<2x1x1xf32> to vector<2x1xf32>
      %45 = vector.broadcast %44 : vector<2x1xf32> to vector<2x32xf32>
      %46 = arith.divf %42, %45 : vector<2x32xf32>
      %c0_36 = arith.constant 0 : index
      %c0_37 = arith.constant 0 : index
      %47 = vector.load %arg5[%c0_36, %c0_37] : memref<2x32xf32, #tpu.memory_space<vmem>>, vector<2x32xf32>
      tpu.vector_store %arg5[%c0_36, %c0_37], %46 {strides = array<i32>} : memref<2x32xf32, #tpu.memory_space<vmem>>, vector<2x32xf32>,
    } else {
    }
    return
  }
  func.func @transform_0(%arg0: i32, %arg1: i32) -> (i32, i32, i32) {
    %c0_i32 = arith.constant 0 : i32
    %c0_i32_0 = arith.constant 0 : i32
    return %arg0, %arg1, %c0_i32 : i32, i32, i32
  }
  func.func @transform_1(%arg0: i32, %arg1: i32) -> (i32, i32) {
    %c0_i32 = arith.constant 0 : i32
    %c0_i32_0 = arith.constant 0 : i32
    %c0_i32_1 = arith.constant 0 : i32
    return %c0_i32, %c0_i32_0 : i32, i32
  }
  func.func @transform_2(%arg0: i32, %arg1: i32) -> (i32, i32) {
    %c0_i32 = arith.constant 0 : i32
    %c0_i32_0 = arith.constant 0 : i32
    %c0_i32_1 = arith.constant 0 : i32
    return %c0_i32, %c0_i32_0 : i32, i32
  }
  func.func @transform_3(%arg0: i32, %arg1: i32) -> (i32, i32) {
    %c0_i32 = arith.constant 0 : i32
    %c0_i32_0 = arith.constant 0 : i32
    return %arg0, %c0_i32 : i32, i32
  }
}

</mosaic_0001>

<llo_original>
// kernel: tpu_custom_call.1
$region0: #{tpu_custom_call.1}
  #allocation0 [shape = 'u32[]', space=smem, size = 0x4, offset = 0x4, fixed_abs, tag = 'smem constant byte address 0x4 - core index']
  #allocation1 [shape = 'u32[144,128]{1,0:T(1,128)}', space=vmem, size = 0x12000, scoped, tag = 'internal scratch']
  #allocation2 [shape = 'f32[2,1,1]{2,1,0:T(1,128)}', space=vmem, size = 0x400, scoped, tag = 'scratch operand']
  #allocation3 [shape = 'f32[2,1,1]{2,1,0:T(1,128)}', space=vmem, size = 0x400, scoped, tag = 'scratch operand']
  #allocation4 [shape = 'f32[2,32]{1,0:T(2,128)}', space=vmem, size = 0x400, scoped, tag = 'scratch operand']
  #allocation5 [shape = 'f32[1,1]{1,0:T(1,128)S(6)}', space=smem, size = 0x200, scoped, tag = 'scoped memory for tpu_custom_call.1']
  %s0 = inlined_call_operand.hbm [shape: f32[2,8,32], index: 0, kind: input, shape index: {}]
  %s1 = inlined_call_operand.vmem [shape: f32[1,32], index: 1, kind: input, shape index: {}]
  %s2 = inlined_call_operand.<no memory space> [shape: f32[1,1], index: 2, kind: input, shape index: {}]
  %s3 = inlined_call_operand.hbm [shape: f32[2,32], index: 3, kind: output, shape index: {}]
  %s4 = sld [smem:[#allocation0]]
  $region34: #{tpu_custom_call.1} parent=0
    _
  %s6 = ssub.s32 1, %s4
  %s7 = scalar_select 0, %s6, %s4
  %8 = sst [smem:[#allocation5]] %s2
  $region1: #{tpu_custom_call.1} parent=0
    #allocation6 [shape = 'u8[8192]{0}', space=vmem, size = 0x2000, scoped, tag = 'input window, operand 0, single buffered']
    #allocation7 [shape = 's32[1]{0}', space=sflag, size = 0x4, scoped, tag = 'scoped memory for tpu_custom_call.1']
    #allocation8 [shape = 's32[1]{0}', space=sflag, size = 0x4, scoped, tag = 'scoped memory for tpu_custom_call.1']
    #allocation9 [shape = 'u8[1024]{0}', space=vmem, size = 0x400, scoped, tag = 'output window, operand 0, single buffered']
    %9 = vsyncpa [#allocation7], 0
    %10 = vsyncpa [#allocation8], 0
    // Predicated region
    $region2: #{tpu_custom_call.1} parent=1 // pred_check
      _
    $region3: #{tpu_custom_call.1} parent=1 // pred_check_branch
      %12 = sbr.rel (0) target = $region5
    $region4: #{tpu_custom_call.1} parent=1 // pred_region
      %s14 = ssub.s32 256, 256
      %15 = vsyncadd [#allocation7], %s14
      %s16 = sshll.u32 [#allocation6], 4
      %s17 = int_to_ptr.vmem [resolvable:$true] %s16
      %22 = dma.hbm_to_vmem [thread:$0]  %s0, 256, %s17, [#allocation7], 128, 128, 8
    $region5: #{tpu_custom_call.1} parent=1 // pred_fallthru
      _
    // Predicated region
    $region6: #{tpu_custom_call.1} parent=1 // pred_check
      _
    $region7: #{tpu_custom_call.1} parent=1 // pred_check_branch
      %24 = sbr.rel (0) target = $region9
    $region8: #{tpu_custom_call.1} parent=1 // pred_region
      _
    $region9: #{tpu_custom_call.1} parent=1 // pred_fallthru
      _
    // Predicated region
    $region10: #{tpu_custom_call.1} parent=1 // pred_check
      _
    $region11: #{tpu_custom_call.1} parent=1 // pred_check_branch
      %26 = sbr.rel (0) target = $region13
    $region12: #{tpu_custom_call.1} parent=1 // pred_region
      _
    $region13: #{tpu_custom_call.1} parent=1 // pred_fallthru
      _
    // Predicated region
    $region14: #{tpu_custom_call.1} parent=1 // pred_check
      _
    $region15: #{tpu_custom_call.1} parent=1 // pred_check_branch
      %28 = sbr.rel (0) target = $region17
    $region16: #{tpu_custom_call.1} parent=1 // pred_region
      %29 = dma.done [#allocation7], 256
    $region17: #{tpu_custom_call.1} parent=1 // pred_fallthru
      _
    %p30 = scmp.eq.s32.totalorder 0, 0
    // Predicated region
    $region18: #{tpu_custom_call.1} parent=1 // pred_check
      %p31 = pneg %p30
    $region19: #{tpu_custom_call.1} parent=1 // pred_check_branch
      %33 = sbr.rel (%p31) target = $region21
    $region20: #{tpu_custom_call.1} parent=1 // pred_region
      %vm34 = vcmask 0
      %35 = vst.msk [vmem:[#allocation2] sm:$0x1] %vm34, -inf
      %36 = vst.msk [vmem:[#allocation2 + $0x1] sm:$0x1] %vm34, -inf
      %37 = vst.msk [vmem:[#allocation3] sm:$0x1] %vm34, 0.0
      %38 = vst.msk [vmem:[#allocation3 + $0x1] sm:$0x1] %vm34, 0.0
      %vm39 = vcmask 254976
      %40 = vst.msk [vmem:[#allocation4] sm:$0x3] %vm39, 0.0
    $region21: #{tpu_custom_call.1} parent=1 // pred_fallthru
      _
    %v41 = vld [vmem:[%s1] sm:$0x1]
    %v42 = vld [vmem:[#allocation6] sm:$0xff]
    %v43 = vld [vmem:[#allocation6 + $0x8] sm:$0xff]
    %v45 = vlaneseq
    %v46 = vshrl.u32 %v45, 7
    %v47 = vsub.s32 0, %v46
    %v48 = vrot.slane %v41, %v47
    %v50 = vmul.f32 %v42, %v48
    %v51 = vmul.f32 %v43, %v48
    %vm52 = vcmask 261120
    %v53 = vsel %vm52, %v50, 0.0
    %54 = vadd.xlane.f32.xlu0 %v53
    %v55 = vpop.xlane.xlu0 %54
    %v56 = vsel %vm52, %v51, 0.0
    %57 = vadd.xlane.f32.xlu0 %v56
    %v58 = vpop.xlane.xlu0 %57
    %s59 = sld [smem:[#allocation5]]
    %v60 = vstv %s59
    %v61 = vadd.f32 %v55, %v60
    %v62 = vadd.f32 %v58, %v60
    %v63 = vld [vmem:[#allocation2] sm:$0x1]
    %v64 = vld [vmem:[#allocation2 + $0x1] sm:$0x1]
    %v65 = vrot.slane %v61, 4
    %v66 = vmax.f32 %v61, %v65
    %v67 = vrot.slane %v66, 2
    %v68 = vmax.f32 %v66, %v67
    %v69 = vrot.slane %v68, 1
    %v70 = vmax.f32 %v68, %v69
    %v71 = vrot.slane %v62, 4
    %v72 = vmax.f32 %v62, %v71
    %v73 = vrot.slane %v72, 2
    %v74 = vmax.f32 %v72, %v73
    %v75 = vrot.slane %v74, 1
    %v76 = vmax.f32 %v74, %v75
    %v77 = vmax.f32 %v63, %v70
    %v78 = vmax.f32 %v64, %v76
    %v79 = vsub.f32 %v63, %v77
    %v80 = vsub.f32 %v64, %v78
    %v81 = vmul.f32 %v79, 1.442695
    %v82 = vpow.pop %v81
    %v83 = vmul.f32 %v80, 1.442695
    %v84 = vpow.pop %v83
    %v87 = vlaneseq
    %v88 = vshrl.u32 %v87, 7
    %v89 = vsub.s32 0, %v88
    %v90 = vrot.slane %v77, %v89
    %v91 = vlaneseq
    %v92 = vshrl.u32 %v91, 7
    %v93 = vsub.s32 0, %v92
    %v94 = vrot.slane %v78, %v93
    %v97 = vsub.f32 %v61, %v90
    %v98 = vsub.f32 %v62, %v94
    %v99 = vmul.f32 %v97, 1.442695
    %v100 = vpow.pop %v99
    %v101 = vmul.f32 %v98, 1.442695
    %v102 = vpow.pop %v101
    %v103 = vld [vmem:[#allocation3] sm:$0x1]
    %v104 = vld [vmem:[#allocation3 + $0x1] sm:$0x1]
    %v105 = vmul.f32 %v82, %v103
    %v106 = vmul.f32 %v84, %v104
    %vm107 = vcmask 7168
    %v108 = vsel %vm107, %v100, 0.0
    %v109 = vrot.slane %v108, 4
    %v110 = vadd.f32 %v108, %v109
    %v111 = vrot.slane %v110, 2
    %v112 = vadd.f32 %v110, %v111
    %v113 = vrot.slane %v112, 1
    %v114 = vadd.f32 %v112, %v113
    %v115 = vsel %vm107, %v102, 0.0
    %v116 = vrot.slane %v115, 4
    %v117 = vadd.f32 %v115, %v116
    %v118 = vrot.slane %v117, 2
    %v119 = vadd.f32 %v117, %v118
    %v120 = vrot.slane %v119, 1
    %v121 = vadd.f32 %v119, %v120
    %v122 = vadd.f32 %v105, %v114
    %v123 = vadd.f32 %v106, %v121
    %vm124 = vcmask 0
    %125 = vst.msk [vmem:[#allocation3] sm:$0x1] %vm124, %v122
    %126 = vst.msk [vmem:[#allocation3 + $0x1] sm:$0x1] %vm124, %v123
    %v127 = vld [vmem:[#allocation6] sm:$0xff]
    %v128 = vld [vmem:[#allocation6 + $0x8] sm:$0xff]
    %v129 = vld [vmem:[#allocation4] sm:$0x3]
    %131 = vset.pattern.permute.xlu0 0
    %132 = vperm.xlu0 %131, %v82
    %v133 = vpop.permute.xlu0 %132
    %v135 = vlaneseq
    %v136 = vshrl.u32 %v135, 7
    %v137 = vsub.s32 0, %v136
    %v138 = vrot.slane %v133, %v137
    %140 = vset.pattern.permute.xlu0 0
    %141 = vperm.xlu0 %140, %v84
    %v142 = vpop.permute.xlu0 %141
    %v144 = vlaneseq
    %v145 = vshrl.u32 %v144, 7
    %v146 = vsub.s32 0, %v145
    %v147 = vrot.slane %v142, %v146
    %v150 = vunpack.c.l.s4 1966171168
    %v151 = vunpack.c.0.s8 %v150
    %v152 = vlaneseq
    %v153 = vshrl.u32 %v152, 7
    %v154 = vsub.s32 %v151, %v153
    %v155 = vrot.slane %v129, %v154
    %v156 = vcombine.high %v155, %v155
    %v158 = vunpack.c.l.s4 1966171168
    %v159 = vunpack.c.0.s8 %v158
    %v160 = vlaneseq
    %v161 = vshrl.u32 %v160, 7
    %v162 = vsub.s32 %v159, %v161
    %v163 = vrot.slane %v155, %v162
    %v165 = vunpack.c.l.s4 1966171168
    %v166 = vunpack.c.0.s8 %v165
    %v167 = vlaneseq
    %v168 = vshrl.u32 %v167, 7
    %v169 = vsub.s32 %v166, %v168
    %v170 = vrot.slane %v156, %v169
    %v173 = vmul.f32 %v138, %v163
    %v174 = vmul.f32 %v147, %v170
    %176 = vset.pattern.permute.xlu0 0
    %177 = vperm.xlu0 %176, %v100
    %v178 = vpop.permute.xlu0 %177
    %181 = vset.pattern.permute.xlu0 0
    %182 = vperm.xlu0 %181, %v102
    %v183 = vpop.permute.xlu0 %182
    %v185 = vmul.f32 %v178, %v127
    %v186 = vmul.f32 %v183, %v128
    %v187 = vsel %vm52, %v185, 0.0
    %v188 = vrot.slane %v187, 4
    %v189 = vadd.f32 %v187, %v188
    %v190 = vrot.slane %v189, 2
    %v191 = vadd.f32 %v189, %v190
    %v192 = vrot.slane %v191, 1
    %v193 = vadd.f32 %v191, %v192
    %v194 = vsel %vm52, %v186, 0.0
    %v195 = vrot.slane %v194, 4
    %v196 = vadd.f32 %v194, %v195
    %v197 = vrot.slane %v196, 2
    %v198 = vadd.f32 %v196, %v197
    %v199 = vrot.slane %v198, 1
    %v200 = vadd.f32 %v198, %v199
    %v204 = vunpack.c.l.s4 1966171168
    %v205 = vunpack.c.0.s8 %v204
    %v206 = vlaneseq
    %v207 = vshrl.u32 %v206, 7
    %v208 = vsub.s32 %v205, %v207
    %v209 = vrot.slane %v193, %v208
    %v211 = vunpack.c.l.s4 1966171168
    %v212 = vunpack.c.0.s8 %v211
    %v213 = vlaneseq
    %v214 = vshrl.u32 %v213, 7
    %v215 = vsub.s32 %v212, %v214
    %v216 = vrot.slane %v209, %v215
    %v218 = vunpack.c.l.s4 1966171168
    %v219 = vunpack.c.0.s8 %v218
    %v220 = vlaneseq
    %v221 = vshrl.u32 %v220, 7
    %v222 = vsub.s32 %v219, %v221
    %v223 = vrot.slane %v200, %v222
    %v225 = vunpack.c.l.s4 1966171168
    %v226 = vunpack.c.0.s8 %v225
    %v227 = vlaneseq
    %v228 = vshrl.u32 %v227, 7
    %v229 = vsub.s32 %v226, %v228
    %v230 = vrot.slane %v223, %v229
    %v233 = vadd.f32 %v173, %v216
    %v234 = vadd.f32 %v174, %v230
    %v237 = vcombine.low %v233, %v234
    %v239 = vunpack.c.l.s4 1966171168
    %v240 = vunpack.c.0.s8 %v239
    %v241 = vlaneseq
    %v242 = vshrl.u32 %v241, 7
    %v243 = vsub.s32 %v240, %v242
    %v244 = vrot.slane %v237, %v243
    %v246 = vunpack.c.l.s4 1966171168
    %v247 = vunpack.c.0.s8 %v246
    %v248 = vlaneseq
    %v249 = vshrl.u32 %v248, 7
    %v250 = vsub.s32 %v247, %v249
    %v251 = vrot.slane %v244, %v250
    %vm253 = vcmask 254976
    %254 = vst.msk [vmem:[#allocation4] sm:$0x3] %vm253, %v251
    %255 = vst.msk [vmem:[#allocation2] sm:$0x1] %vm124, %v77
    %256 = vst.msk [vmem:[#allocation2 + $0x1] sm:$0x1] %vm124, %v78
    // Predicated region
    $region22: #{tpu_custom_call.1} parent=1 // pred_check
      %p257 = pneg %p30
    $region23: #{tpu_custom_call.1} parent=1 // pred_check_branch
      %259 = sbr.rel (%p257) target = $region25
    $region24: #{tpu_custom_call.1} parent=1 // pred_region
      %v260 = vld [vmem:[#allocation4] sm:$0x3]
      %v261 = vld [vmem:[#allocation3] sm:$0x1]
      %v262 = vld [vmem:[#allocation3 + $0x1] sm:$0x1]
      %264 = vset.pattern.permute.xlu0 0
      %265 = vperm.xlu0 %264, %v261
      %v266 = vpop.permute.xlu0 %265
      %v268 = vlaneseq
      %v269 = vshrl.u32 %v268, 7
      %v270 = vsub.s32 0, %v269
      %v271 = vrot.slane %v266, %v270
      %273 = vset.pattern.permute.xlu0 0
      %274 = vperm.xlu0 %273, %v262
      %v275 = vpop.permute.xlu0 %274
      %v277 = vlaneseq
      %v278 = vshrl.u32 %v277, 7
      %v279 = vsub.s32 0, %v278
      %v280 = vrot.slane %v275, %v279
      %v283 = vcombine.low %v271, %v280
      %v285 = vunpack.c.l.s4 1966171168
      %v286 = vunpack.c.0.s8 %v285
      %v287 = vlaneseq
      %v288 = vshrl.u32 %v287, 7
      %v289 = vsub.s32 %v286, %v288
      %v290 = vrot.slane %v283, %v289
      %v292 = vunpack.c.l.s4 1966171168
      %v293 = vunpack.c.0.s8 %v292
      %v294 = vlaneseq
      %v295 = vshrl.u32 %v294, 7
      %v296 = vsub.s32 %v293, %v295
      %v297 = vrot.slane %v290, %v296
      %v299 = vrcp.pop %v297
      %v300 = vmul.f32 %v260, %v299
      %301 = vst.msk [vmem:[#allocation9] sm:$0x3] %vm253, %v300
    $region25: #{tpu_custom_call.1} parent=1 // pred_fallthru
      _
    // Predicated region
    $region26: #{tpu_custom_call.1} parent=1 // pred_check
      _
    $region27: #{tpu_custom_call.1} parent=1 // pred_check_branch
      %303 = sbr.rel (0) target = $region29
    $region28: #{tpu_custom_call.1} parent=1 // pred_region
      %s305 = ssub.s32 32, 32
      %306 = vsyncadd [#allocation8], %s305
      %s308 = sshll.u32 [#allocation9], 4
      %s309 = int_to_ptr.vmem [resolvable:$true] %s308
      %311 = dma.vmem_to_hbm [thread:$0]  %s309, 32, %s3, [#allocation8]
    $region29: #{tpu_custom_call.1} parent=1 // pred_fallthru
      _
    // Predicated region
    $region30: #{tpu_custom_call.1} parent=1 // pred_check
      _
    $region31: #{tpu_custom_call.1} parent=1 // pred_check_branch
      %313 = sbr.rel (0) target = $region33
    $region32: #{tpu_custom_call.1} parent=1 // pred_region
      %314 = dma.done [#allocation8], 32
    $region33: #{tpu_custom_call.1} parent=1 // pred_fallthru
      _
    %315 = vsyncpa [#allocation7], 1
    %316 = vsyncpa [#allocation8], 1

</llo_original>
